<compile_context>
chip_gen: v7x
topology: tpu7x:2x2x1
jax: 0.10.0
libtpu: 0.0.40
codegen_flags: <defaults>
</compile_context>

<pallas_src>
import functools

import jax
import jax.numpy as jnp
from jax.experimental import pallas as pl
from jax.experimental.pallas import tpu as pltpu

INPUT_SEQ1 = 288   # in_channels of conv1 (features of x)
INPUT_SEQ2 = 32    # features of z / hidden width
OUTPUT_SEQ = 12    # regression outputs
C1_OUT = 128
C2_OUT = 32        # == flatten_dim (32 * 1)

DEFAULT_TILE_B = 4096          # rows per grid step (amortizes ~0.35us/step overhead)
VMEM_LIMIT_BYTES = 48 << 20    # fits every generation (v7x physical = 64 MiB)
_SPLIT_THRESHOLD = 1024        # split a would-be single tile in two for v7x's 2 TCs


def _round_up(n, m):
    return ((n + m - 1) // m) * m


def _pick_tile(batch, tile_b):
    """Choose the batch tile: big tiles for bandwidth, >=2 grid steps when worthwhile."""
    tile_b = max(8, (tile_b // 8) * 8)          # keep requested tile sublane-aligned
    if batch > tile_b:
        return tile_b                            # multi-tile grid, ragged tail masked
    if batch >= _SPLIT_THRESHOLD:
        return _round_up((batch + 1) // 2, 8)    # 2 tiles -> both TCs busy on v7x
    return batch                                 # single full-extent block (always legal)


def _two_input_regressor_kernel(x_ref, z_ref, w1_ref, w2wt_ref, wab_ref, bias_ref,
                                out_ref):
    # Activations arrive f32 from HBM; cast to bf16 in-kernel (mem-bound, VPU has slack).
    x = x_ref[...].astype(jnp.bfloat16)          # (TB, 288)
    z = z_ref[...].astype(jnp.bfloat16)          # (TB, 32)

    # Static slices of the packed bias slab (4, 128) f32.
    b1 = bias_ref[0:1, :]                        # (1, 128)
    b2 = bias_ref[1:2, 0:C2_OUT]                 # (1, 32)
    bt = bias_ref[2:3, 0:INPUT_SEQ2]             # (1, 32)
    bc = bias_ref[3:4, 0:OUTPUT_SEQ]             # (1, 12)

    # conv1 (center tap) + ReLU; f32 accumulation, bf16 MXU operands.
    h1 = jnp.dot(x, w1_ref[...], preferred_element_type=jnp.float32) + b1
    h1 = jnp.maximum(h1, 0.0).astype(jnp.bfloat16)                     # (TB, 128)

    # conv2 (center tap) + ReLU; flatten (TB,32,1)->(TB,32) is implicit.
    h2 = jnp.dot(h1, w2wt_ref[0:C1_OUT, :],
                 preferred_element_type=jnp.float32) + b2
    h2 = jnp.maximum(h2, 0.0).astype(jnp.bfloat16)                     # (TB, 32)

    # time_comp Linear + ReLU.
    h3 = jnp.dot(h2, w2wt_ref[C1_OUT:C1_OUT + INPUT_SEQ2, :],
                 preferred_element_type=jnp.float32) + bt
    h3 = jnp.maximum(h3, 0.0).astype(jnp.bfloat16)                     # (TB, 32)

    # final1(cat(h3, z)) -> final2, folded to one exact split matmul.
    out = (jnp.dot(h3, wab_ref[0:INPUT_SEQ2, :],
                   preferred_element_type=jnp.float32)
           + jnp.dot(z, wab_ref[INPUT_SEQ2:2 * INPUT_SEQ2, :],
                     preferred_element_type=jnp.float32)
           + bc)                                                       # (TB, 12) f32
    out_ref[...] = out.astype(out_ref.dtype)


def prepare_params(params):
    """One-time weight glue: center-tap slice, transpose, final1*final2 fold, packing."""
    (conv1_w, conv1_b, conv2_w, conv2_b,
     tc_w, tc_b, f1_w, f1_b, f2_w, f2_b) = params

    w1 = jnp.transpose(conv1_w[:, :, 2]).astype(jnp.bfloat16)          # (288, 128)
    w2 = jnp.transpose(conv2_w[:, :, 2]).astype(jnp.bfloat16)          # (128, 32)
    wt = jnp.transpose(tc_w).astype(jnp.bfloat16)                      # (32, 32)
    w2wt = jnp.concatenate([w2, wt], axis=0)                           # (160, 32) bf16

    wf2 = jnp.transpose(f2_w).astype(jnp.float32)                      # (32, 12)
    wa = (jnp.transpose(f1_w[:, :INPUT_SEQ2]) @ wf2).astype(jnp.bfloat16)   # acts on h3
    wb = (jnp.transpose(f1_w[:, INPUT_SEQ2:]) @ wf2).astype(jnp.bfloat16)   # acts on z
    wab = jnp.concatenate([wa, wb], axis=0)                            # (64, 12) bf16

    bc = (f1_b.astype(jnp.float32) @ wf2 + f2_b.astype(jnp.float32))   # (12,)
    bias = jnp.zeros((4, 128), jnp.float32)
    bias = bias.at[0, :C1_OUT].set(conv1_b.astype(jnp.float32))
    bias = bias.at[1, :C2_OUT].set(conv2_b.astype(jnp.float32))
    bias = bias.at[2, :INPUT_SEQ2].set(tc_b.astype(jnp.float32))
    bias = bias.at[3, :OUTPUT_SEQ].set(bc)

    return (w1, w2wt, wab, bias)


@functools.partial(jax.jit, static_argnames=("tile_b",))
def two_input_regressor(x, z, prepared, *, tile_b=DEFAULT_TILE_B):
    """x: (B, 288) f32, z: (B, 32) f32, prepared = prepare_params(params) -> (B, 12) f32."""
    w1, w2wt, wab, bias = prepared
    B = x.shape[0]

    tb = _pick_tile(B, tile_b)
    grid = (pl.cdiv(B, tb),)     # ragged final block: OOB stores masked, rows independent

    def const_spec(arr):
        # Full-extent block, constant index_map -> fetched once, VMEM-resident after.
        return pl.BlockSpec(arr.shape, lambda i: (0, 0))

    out = pl.pallas_call(
        _two_input_regressor_kernel,
        out_shape=jax.ShapeDtypeStruct((B, OUTPUT_SEQ), jnp.float32),
        grid=grid,
        in_specs=[
            pl.BlockSpec((tb, INPUT_SEQ1), lambda i: (i, 0)),   # x tile (f32)
            pl.BlockSpec((tb, INPUT_SEQ2), lambda i: (i, 0)),   # z tile (f32)
            const_spec(w1),
            const_spec(w2wt),
            const_spec(wab),
            const_spec(bias),
        ],
        out_specs=pl.BlockSpec((tb, OUTPUT_SEQ), lambda i: (i, 0)),
        compiler_params=pltpu.CompilerParams(
            dimension_semantics=("parallel",),
            vmem_limit_bytes=VMEM_LIMIT_BYTES),
    )(x, z, w1, w2wt, wab, bias)
    return out


def init_params(key):
    """Deterministic synthetic parameters with the PyTorch module's shapes."""
    ks = jax.random.split(key, 10)
    conv1_w = jax.random.normal(ks[0], (C1_OUT, INPUT_SEQ1, 5), jnp.float32) * 0.02
    conv1_b = jax.random.normal(ks[1], (C1_OUT,), jnp.float32) * 0.02
    conv2_w = jax.random.normal(ks[2], (C2_OUT, C1_OUT, 5), jnp.float32) * 0.02
    conv2_b = jax.random.normal(ks[3], (C2_OUT,), jnp.float32) * 0.02
    tc_w = jax.random.normal(ks[4], (INPUT_SEQ2, C2_OUT), jnp.float32) * 0.05
    tc_b = jax.random.normal(ks[5], (INPUT_SEQ2,), jnp.float32) * 0.05
    f1_w = jax.random.normal(ks[6], (INPUT_SEQ2, INPUT_SEQ2 * 2), jnp.float32) * 0.05
    f1_b = jax.random.normal(ks[7], (INPUT_SEQ2,), jnp.float32) * 0.05
    f2_w = jax.random.normal(ks[8], (OUTPUT_SEQ, INPUT_SEQ2), jnp.float32) * 0.05
    f2_b = jax.random.normal(ks[9], (OUTPUT_SEQ,), jnp.float32) * 0.05
    return (conv1_w, conv1_b, conv2_w, conv2_b,
            tc_w, tc_b, f1_w, f1_b, f2_w, f2_b)


def reference_forward(x, z, params):
    """Pure-JAX f32 reference mirroring the PyTorch forward (incl. full 5-tap conv)."""
    (conv1_w, conv1_b, conv2_w, conv2_b,
     tc_w, tc_b, f1_w, f1_b, f2_w, f2_b) = params
    xl = x[:, :, None]                                                 # (B, 288, 1) NCL
    h = jax.lax.conv_general_dilated(
        xl, conv1_w, window_strides=(1,), padding=[(2, 2)],
        dimension_numbers=("NCH", "OIH", "NCH"))
    h = jax.nn.relu(h + conv1_b[None, :, None])
    h = jax.lax.conv_general_dilated(
        h, conv2_w, window_strides=(1,), padding=[(2, 2)],
        dimension_numbers=("NCH", "OIH", "NCH"))
    h = jax.nn.relu(h + conv2_b[None, :, None])
    h = h.reshape(h.shape[0], -1)                                      # (B, 32)
    h = jax.nn.relu(h @ tc_w.T + tc_b)
    hz = jnp.concatenate([h, z], axis=1)                               # (B, 64)
    hz = hz @ f1_w.T + f1_b
    return hz @ f2_w.T + f2_b                                          # (B, 12)


if __name__ == "__main__":
    key = jax.random.PRNGKey(0)
    kx, kz, kp = jax.random.split(key, 3)

    params = init_params(kp)
    prepared = prepare_params(params)

    # --- small test (single full-extent block) ---
    B = 8
    x = jax.random.normal(kx, (B, INPUT_SEQ1), jnp.float32)
    z = jax.random.normal(kz, (B, INPUT_SEQ2), jnp.float32)

    out = jax.block_until_ready(two_input_regressor(x, z, prepared))
    ref = jax.block_until_ready(reference_forward(x, z, params))
    assert out.shape == (B, OUTPUT_SEQ), out.shape
    # bf16 MXU operands with f32 accumulation -> loosened tolerance vs f32 reference.
    assert jnp.allclose(out, ref, atol=1e-2, rtol=1e-2), float(jnp.abs(out - ref).max())

    # --- exercise the multi-tile grid + ragged (masked) final block path ---
    B2 = 300
    x2 = jax.random.normal(jax.random.fold_in(kx, 1), (B2, INPUT_SEQ1), jnp.float32)
    z2 = jax.random.normal(jax.random.fold_in(kz, 1), (B2, INPUT_SEQ2), jnp.float32)
    out2 = jax.block_until_ready(two_input_regressor(x2, z2, prepared, tile_b=128))
    ref2 = jax.block_until_ready(reference_forward(x2, z2, params))
    assert out2.shape == (B2, OUTPUT_SEQ), out2.shape
    assert jnp.allclose(out2, ref2, atol=1e-2, rtol=1e-2), float(jnp.abs(out2 - ref2).max())

    print("KERNEL_OK")
</pallas_src>

<mosaic_0001>
module attributes {stable_mosaic.version = 11 : i64} {
  func.func @_two_input_regressor_kernel(%arg0: i32, %arg1: memref<8x288xf32, #tpu.memory_space<vmem>>, %arg2: memref<8x32xf32, #tpu.memory_space<vmem>>, %arg3: memref<288x128xbf16, #tpu.memory_space<vmem>>, %arg4: memref<160x32xbf16, #tpu.memory_space<vmem>>, %arg5: memref<64x12xbf16, #tpu.memory_space<vmem>>, %arg6: memref<4x128xf32, #tpu.memory_space<vmem>>, %arg7: memref<8x12xf32, #tpu.memory_space<vmem>>) attributes {dimension_semantics = [#tpu.dimension_semantics<parallel>], iteration_bounds = array<i64: 1>, scalar_prefetch = 0 : i64, scratch_operands = 0 : i64, tpu.core_type = #tpu.core_type<tc>, window_params = [{transform_indices = @transform_0, window_bounds = array<i64: 8, 288>}, {transform_indices = @transform_1, window_bounds = array<i64: 8, 32>}, {pipeline_mode = #tpu.pipeline_mode<synchronous>, transform_indices = @transform_2, window_bounds = array<i64: 288, 128>}, {pipeline_mode = #tpu.pipeline_mode<synchronous>, transform_indices = @transform_3, window_bounds = array<i64: 160, 32>}, {pipeline_mode = #tpu.pipeline_mode<synchronous>, transform_indices = @transform_4, window_bounds = array<i64: 64, 12>}, {pipeline_mode = #tpu.pipeline_mode<synchronous>, transform_indices = @transform_5, window_bounds = array<i64: 4, 128>}, {transform_indices = @transform_6, window_bounds = array<i64: 8, 12>}]} {
    %c0 = arith.constant 0 : index
    %c0_0 = arith.constant 0 : index
    %0 = vector.load %arg1[%c0, %c0_0] : memref<8x288xf32, #tpu.memory_space<vmem>>, vector<8x288xf32>
    %1 = arith.truncf %0 : vector<8x288xf32> to vector<8x288xbf16>
    %c0_1 = arith.constant 0 : index
    %c0_2 = arith.constant 0 : index
    %2 = vector.load %arg2[%c0_1, %c0_2] : memref<8x32xf32, #tpu.memory_space<vmem>>, vector<8x32xf32>
    %3 = arith.truncf %2 : vector<8x32xf32> to vector<8x32xbf16>
    %c0_3 = arith.constant 0 : index
    %c0_4 = arith.constant 0 : index
    %4 = vector.load %arg6[%c0_3, %c0_4] : memref<4x128xf32, #tpu.memory_space<vmem>>, vector<1x128xf32>
    %c1 = arith.constant 1 : index
    %c0_5 = arith.constant 0 : index
    %5 = vector.load %arg6[%c1, %c0_5] : memref<4x128xf32, #tpu.memory_space<vmem>>, vector<1x32xf32>
    %c2 = arith.constant 2 : index
    %c0_6 = arith.constant 0 : index
    %6 = vector.load %arg6[%c2, %c0_6] : memref<4x128xf32, #tpu.memory_space<vmem>>, vector<1x32xf32>
    %c3 = arith.constant 3 : index
    %c0_7 = arith.constant 0 : index
    %7 = vector.load %arg6[%c3, %c0_7] : memref<4x128xf32, #tpu.memory_space<vmem>>, vector<1x12xf32>
    %c0_8 = arith.constant 0 : index
    %c0_9 = arith.constant 0 : index
    %8 = vector.load %arg3[%c0_8, %c0_9] : memref<288x128xbf16, #tpu.memory_space<vmem>>, vector<288x128xbf16>
    %cst = arith.constant dense<0.000000e+00> : vector<8x128xf32>
    %9 = tpu.matmul %1, %8, %cst {dimension_numbers = #tpu.dot_dimension_numbers<[1], [0], [0], [1], [0, 0, 1, 1], [], []>} : vector<8x288xbf16>, vector<288x128xbf16>, vector<8x128xf32> -> vector<8x128xf32>
    %10 = vector.broadcast %4 : vector<1x128xf32> to vector<8x128xf32>
    %11 = arith.addf %9, %10 : vector<8x128xf32>
    %cst_10 = arith.constant 0.000000e+00 : f32
    %12 = vector.broadcast %cst_10 : f32 to vector<8x128xf32>
    %13 = arith.maximumf %11, %12 : vector<8x128xf32>
    %14 = arith.truncf %13 : vector<8x128xf32> to vector<8x128xbf16>
    %c0_11 = arith.constant 0 : index
    %c0_12 = arith.constant 0 : index
    %15 = vector.load %arg4[%c0_11, %c0_12] : memref<160x32xbf16, #tpu.memory_space<vmem>>, vector<128x32xbf16>
    %cst_13 = arith.constant dense<0.000000e+00> : vector<8x32xf32>
    %16 = tpu.matmul %14, %15, %cst_13 {dimension_numbers = #tpu.dot_dimension_numbers<[1], [0], [0], [1], [0, 0, 1, 1], [], []>} : vector<8x128xbf16>, vector<128x32xbf16>, vector<8x32xf32> -> vector<8x32xf32>
    %17 = vector.broadcast %5 : vector<1x32xf32> to vector<8x32xf32>
    %18 = arith.addf %16, %17 : vector<8x32xf32>
    %cst_14 = arith.constant 0.000000e+00 : f32
    %19 = vector.broadcast %cst_14 : f32 to vector<8x32xf32>
    %20 = arith.maximumf %18, %19 : vector<8x32xf32>
    %21 = arith.truncf %20 : vector<8x32xf32> to vector<8x32xbf16>
    %c128 = arith.constant 128 : index
    %c0_15 = arith.constant 0 : index
    %22 = vector.load %arg4[%c128, %c0_15] : memref<160x32xbf16, #tpu.memory_space<vmem>>, vector<32x32xbf16>
    %cst_16 = arith.constant dense<0.000000e+00> : vector<8x32xf32>
    %23 = tpu.matmul %21, %22, %cst_16 {dimension_numbers = #tpu.dot_dimension_numbers<[1], [0], [0], [1], [0, 0, 1, 1], [], []>} : vector<8x32xbf16>, vector<32x32xbf16>, vector<8x32xf32> -> vector<8x32xf32>
    %24 = vector.broadcast %6 : vector<1x32xf32> to vector<8x32xf32>
    %25 = arith.addf %23, %24 : vector<8x32xf32>
    %cst_17 = arith.constant 0.000000e+00 : f32
    %26 = vector.broadcast %cst_17 : f32 to vector<8x32xf32>
    %27 = arith.maximumf %25, %26 : vector<8x32xf32>
    %28 = arith.truncf %27 : vector<8x32xf32> to vector<8x32xbf16>
    %c0_18 = arith.constant 0 : index
    %c0_19 = arith.constant 0 : index
    %29 = vector.load %arg5[%c0_18, %c0_19] : memref<64x12xbf16, #tpu.memory_space<vmem>>, vector<32x12xbf16>
    %cst_20 = arith.constant dense<0.000000e+00> : vector<8x12xf32>
    %30 = tpu.matmul %28, %29, %cst_20 {dimension_numbers = #tpu.dot_dimension_numbers<[1], [0], [0], [1], [0, 0, 1, 1], [], []>} : vector<8x32xbf16>, vector<32x12xbf16>, vector<8x12xf32> -> vector<8x12xf32>
    %c32 = arith.constant 32 : index
    %c0_21 = arith.constant 0 : index
    %31 = vector.load %arg5[%c32, %c0_21] : memref<64x12xbf16, #tpu.memory_space<vmem>>, vector<32x12xbf16>
    %cst_22 = arith.constant dense<0.000000e+00> : vector<8x12xf32>
    %32 = tpu.matmul %3, %31, %cst_22 {dimension_numbers = #tpu.dot_dimension_numbers<[1], [0], [0], [1], [0, 0, 1, 1], [], []>} : vector<8x32xbf16>, vector<32x12xbf16>, vector<8x12xf32> -> vector<8x12xf32>
    %33 = arith.addf %30, %32 : vector<8x12xf32>
    %34 = vector.broadcast %7 : vector<1x12xf32> to vector<8x12xf32>
    %35 = arith.addf %33, %34 : vector<8x12xf32>
    %c0_23 = arith.constant 0 : index
    %c0_24 = arith.constant 0 : index
    %36 = vector.load %arg7[%c0_23, %c0_24] : memref<8x12xf32, #tpu.memory_space<vmem>>, vector<8x12xf32>
    tpu.vector_store %arg7[%c0_23, %c0_24], %35 {strides = array<i32>} : memref<8x12xf32, #tpu.memory_space<vmem>>, vector<8x12xf32>,
    return
  }
  func.func @transform_0(%arg0: i32) -> (i32, i32) {
    %c0_i32 = arith.constant 0 : i32
    %c0_i32_0 = arith.constant 0 : i32
    return %arg0, %c0_i32 : i32, i32
  }
  func.func @transform_1(%arg0: i32) -> (i32, i32) {
    %c0_i32 = arith.constant 0 : i32
    %c0_i32_0 = arith.constant 0 : i32
    return %arg0, %c0_i32 : i32, i32
  }
  func.func @transform_2(%arg0: i32) -> (i32, i32) {
    %c0_i32 = arith.constant 0 : i32
    %c0_i32_0 = arith.constant 0 : i32
    %c0_i32_1 = arith.constant 0 : i32
    return %c0_i32, %c0_i32_0 : i32, i32
  }
  func.func @transform_3(%arg0: i32) -> (i32, i32) {
    %c0_i32 = arith.constant 0 : i32
    %c0_i32_0 = arith.constant 0 : i32
    %c0_i32_1 = arith.constant 0 : i32
    return %c0_i32, %c0_i32_0 : i32, i32
  }
  func.func @transform_4(%arg0: i32) -> (i32, i32) {
    %c0_i32 = arith.constant 0 : i32
    %c0_i32_0 = arith.constant 0 : i32
    %c0_i32_1 = arith.constant 0 : i32
    return %c0_i32, %c0_i32_0 : i32, i32
  }
  func.func @transform_5(%arg0: i32) -> (i32, i32) {
    %c0_i32 = arith.constant 0 : i32
    %c0_i32_0 = arith.constant 0 : i32
    %c0_i32_1 = arith.constant 0 : i32
    return %c0_i32, %c0_i32_0 : i32, i32
  }
  func.func @transform_6(%arg0: i32) -> (i32, i32) {
    %c0_i32 = arith.constant 0 : i32
    %c0_i32_0 = arith.constant 0 : i32
    return %arg0, %c0_i32 : i32, i32
  }
}

</mosaic_0001>

<llo_original>
// kernel: two_input_regressor.1
$region0: #{two_input_regressor.1}
  #allocation0 [shape = 'u32[]', space=smem, size = 0x4, offset = 0x4, fixed_abs, tag = 'smem constant byte address 0x4 - core index']
  #allocation1 [shape = 'u32[144,128]{1,0:T(1,128)}', space=vmem, size = 0x12000, scoped, tag = 'internal scratch']
  %s0 = inlined_call_operand.hbm [shape: f32[8,288], index: 0, kind: input, shape index: {}]
  %s1 = inlined_call_operand.vmem [shape: f32[8,32], index: 1, kind: input, shape index: {}]
  %s2 = inlined_call_operand.vmem [shape: bf16[288,128], index: 2, kind: input, shape index: {}]
  %s3 = inlined_call_operand.vmem [shape: bf16[160,32], index: 3, kind: input, shape index: {}]
  %s4 = inlined_call_operand.vmem [shape: bf16[64,12], index: 4, kind: input, shape index: {}]
  %s5 = inlined_call_operand.vmem [shape: f32[4,128], index: 5, kind: input, shape index: {}]
  %s6 = inlined_call_operand.hbm [shape: f32[8,12], index: 6, kind: output, shape index: {}]
  %s7 = sld [smem:[#allocation0]]
  $region38: #{two_input_regressor.1} parent=0
    _
  %s9 = ssub.s32 1, %s7
  %s10 = scalar_select 0, %s9, %s7
  $region1: #{two_input_regressor.1} parent=0
    #allocation2 [shape = 'u8[12288]{0}', space=vmem, size = 0x3000, scoped, tag = 'input window, operand 0, single buffered']
    #allocation3 [shape = 's32[1]{0}', space=sflag, size = 0x4, scoped, tag = 'scoped memory for two_input_regressor.1']
    #allocation4 [shape = 's32[1]{0}', space=sflag, size = 0x4, scoped, tag = 'scoped memory for two_input_regressor.1']
    #allocation5 [shape = 'u8[4096]{0}', space=vmem, size = 0x1000, scoped, tag = 'output window, operand 0, single buffered']
    %11 = vsyncpa [#allocation3], 0
    %12 = vsyncpa [#allocation4], 0
    // Predicated region
    $region2: #{two_input_regressor.1} parent=1 // pred_check
      _
    $region3: #{two_input_regressor.1} parent=1 // pred_check_branch
      %14 = sbr.rel (0) target = $region5
    $region4: #{two_input_regressor.1} parent=1 // pred_region
      %s16 = ssub.s32 384, 384
      %17 = vsyncadd [#allocation3], %s16
      %s19 = sshll.u32 [#allocation2], 4
      %s20 = int_to_ptr.vmem [resolvable:$true] %s19
      %22 = dma.hbm_to_vmem [thread:$0]  %s0, 384, %s20, [#allocation3]
    $region5: #{two_input_regressor.1} parent=1 // pred_fallthru
      _
    // Predicated region
    $region6: #{two_input_regressor.1} parent=1 // pred_check
      _
    $region7: #{two_input_regressor.1} parent=1 // pred_check_branch
      %24 = sbr.rel (0) target = $region9
    $region8: #{two_input_regressor.1} parent=1 // pred_region
      _
    $region9: #{two_input_regressor.1} parent=1 // pred_fallthru
      _
    // Predicated region
    $region10: #{two_input_regressor.1} parent=1 // pred_check
      _
    $region11: #{two_input_regressor.1} parent=1 // pred_check_branch
      %26 = sbr.rel (0) target = $region13
    $region12: #{two_input_regressor.1} parent=1 // pred_region
      _
    $region13: #{two_input_regressor.1} parent=1 // pred_fallthru
      _
    // Predicated region
    $region14: #{two_input_regressor.1} parent=1 // pred_check
      _
    $region15: #{two_input_regressor.1} parent=1 // pred_check_branch
      %28 = sbr.rel (0) target = $region17
    $region16: #{two_input_regressor.1} parent=1 // pred_region
      _
    $region17: #{two_input_regressor.1} parent=1 // pred_fallthru
      _
    // Predicated region
    $region18: #{two_input_regressor.1} parent=1 // pred_check
      _
    $region19: #{two_input_regressor.1} parent=1 // pred_check_branch
      %30 = sbr.rel (0) target = $region21
    $region20: #{two_input_regressor.1} parent=1 // pred_region
      _
    $region21: #{two_input_regressor.1} parent=1 // pred_fallthru
      _
    // Predicated region
    $region22: #{two_input_regressor.1} parent=1 // pred_check
      _
    $region23: #{two_input_regressor.1} parent=1 // pred_check_branch
      %32 = sbr.rel (0) target = $region25
    $region24: #{two_input_regressor.1} parent=1 // pred_region
      _
    $region25: #{two_input_regressor.1} parent=1 // pred_fallthru
      _
    // Predicated region
    $region26: #{two_input_regressor.1} parent=1 // pred_check
      _
    $region27: #{two_input_regressor.1} parent=1 // pred_check_branch
      %34 = sbr.rel (0) target = $region29
    $region28: #{two_input_regressor.1} parent=1 // pred_region
      %35 = dma.done [#allocation3], 384
    $region29: #{two_input_regressor.1} parent=1 // pred_fallthru
      _
    %v37 = vld [vmem:[#allocation2] sm:$0xff]
    %v38 = vld [vmem:[#allocation2 + $0x8] sm:$0xff]
    %v39 = vld [vmem:[#allocation2 + $0x10] sm:$0xff]
    %v40 = vpack.c.bf16 %v37, %v37
    %v41 = vpack.c.bf16 %v38, %v38
    %v42 = vpack.c.bf16 %v39, %v39
    %v43 = vld [vmem:[%s1] sm:$0xff]
    %v44 = vpack.c.bf16 %v43, %v43
    %v45 = vld [vmem:[%s5] sm:$0x1]
    %v46 = vld [vmem:[%s5 + $0x1] sm:$0x1]
    %v47 = vld [vmem:[%s5 + $0x2] sm:$0x1]
    %v48 = vld [vmem:[%s5 + $0x3] sm:$0x1]
    %v49 = vld [vmem:[%s2] sm:$0xf]
    %v50 = vld [vmem:[%s2 + $0x4] sm:$0xf]
    %v51 = vld [vmem:[%s2 + $0x8] sm:$0xf]
    %v52 = vld [vmem:[%s2 + $0xc] sm:$0xf]
    %v53 = vld [vmem:[%s2 + $0x10] sm:$0xf]
    %v54 = vld [vmem:[%s2 + $0x14] sm:$0xf]
    %v55 = vld [vmem:[%s2 + $0x18] sm:$0xf]
    %v56 = vld [vmem:[%s2 + $0x1c] sm:$0xf]
    %v57 = vld [vmem:[%s2 + $0x20] sm:$0xf]
    %v58 = vld [vmem:[%s2 + $0x24] sm:$0xf]
    %v59 = vld [vmem:[%s2 + $0x28] sm:$0xf]
    %v60 = vld [vmem:[%s2 + $0x2c] sm:$0xf]
    %v61 = vld [vmem:[%s2 + $0x30] sm:$0xf]
    %v62 = vld [vmem:[%s2 + $0x34] sm:$0xf]
    %v63 = vld [vmem:[%s2 + $0x38] sm:$0xf]
    %v64 = vld [vmem:[%s2 + $0x3c] sm:$0xf]
    %v65 = vld [vmem:[%s2 + $0x40] sm:$0xf]
    %v66 = vld [vmem:[%s2 + $0x44] sm:$0xf]
    %v67 = vld [vmem:[%s2 + $0x48] sm:$0xf]
    %v68 = vld [vmem:[%s2 + $0x4c] sm:$0xf]
    %v69 = vld [vmem:[%s2 + $0x50] sm:$0xf]
    %v70 = vld [vmem:[%s2 + $0x54] sm:$0xf]
    %v71 = vld [vmem:[%s2 + $0x58] sm:$0xf]
    %v72 = vld [vmem:[%s2 + $0x5c] sm:$0xf]
    %v73 = vld [vmem:[%s2 + $0x60] sm:$0xf]
    %v74 = vld [vmem:[%s2 + $0x64] sm:$0xf]
    %v75 = vld [vmem:[%s2 + $0x68] sm:$0xf]
    %v76 = vld [vmem:[%s2 + $0x6c] sm:$0xf]
    %v77 = vld [vmem:[%s2 + $0x70] sm:$0xf]
    %v78 = vld [vmem:[%s2 + $0x74] sm:$0xf]
    %v79 = vld [vmem:[%s2 + $0x78] sm:$0xf]
    %v80 = vld [vmem:[%s2 + $0x7c] sm:$0xf]
    %v81 = vld [vmem:[%s2 + $0x80] sm:$0xf]
    %v82 = vld [vmem:[%s2 + $0x84] sm:$0xf]
    %v83 = vld [vmem:[%s2 + $0x88] sm:$0xf]
    %v84 = vld [vmem:[%s2 + $0x8c] sm:$0xf]
    %v85 = vlaneseq
    %v86 = vshrl.u32 %v85, 7
    %v87 = vsub.s32 0, %v86
    %v88 = vrot.slane %v45, %v87
    %v125 = vunpack.c.l.b16 %v49
    %v126 = vunpack.c.l.b16 %v50
    %v127 = vunpack.c.l.b16 %v51
    %v128 = vunpack.c.l.b16 %v52
    %v129 = vunpack.c.l.b16 %v53
    %v130 = vunpack.c.l.b16 %v54
    %v131 = vunpack.c.l.b16 %v55
    %v132 = vunpack.c.l.b16 %v56
    %v133 = vunpack.c.l.b16 %v57
    %v134 = vunpack.c.l.b16 %v58
    %v135 = vunpack.c.l.b16 %v59
    %v136 = vunpack.c.l.b16 %v60
    %v137 = vunpack.c.l.b16 %v61
    %v138 = vunpack.c.l.b16 %v62
    %v139 = vunpack.c.l.b16 %v63
    %v140 = vunpack.c.l.b16 %v64
    %v141 = vunpack.c.l.b16 %v65
    %v142 = vunpack.c.l.b16 %v66
    %v143 = vunpack.c.l.b16 %v67
    %v144 = vunpack.c.l.b16 %v68
    %v145 = vunpack.c.l.b16 %v69
    %v146 = vunpack.c.l.b16 %v70
    %v147 = vunpack.c.l.b16 %v71
    %v148 = vunpack.c.l.b16 %v72
    %v149 = vunpack.c.l.b16 %v73
    %v150 = vunpack.c.l.b16 %v74
    %v151 = vunpack.c.l.b16 %v75
    %v152 = vunpack.c.l.b16 %v76
    %v153 = vunpack.c.l.b16 %v77
    %v154 = vunpack.c.l.b16 %v78
    %v155 = vunpack.c.l.b16 %v79
    %v156 = vunpack.c.l.b16 %v80
    %v157 = vunpack.c.l.b16 %v81
    %v158 = vunpack.c.l.b16 %v82
    %v159 = vunpack.c.l.b16 %v83
    %v160 = vunpack.c.l.b16 %v84
    %v161 = vpack.c.b16 %v126, %v125
    %v162 = vpack.c.b16 %v128, %v127
    %v163 = vpack.c.b16 %v130, %v129
    %v164 = vpack.c.b16 %v132, %v131
    %v165 = vpack.c.b16 %v134, %v133
    %v166 = vpack.c.b16 %v136, %v135
    %v167 = vpack.c.b16 %v138, %v137
    %v168 = vpack.c.b16 %v140, %v139
    %v169 = vpack.c.b16 %v142, %v141
    %v170 = vpack.c.b16 %v144, %v143
    %v171 = vpack.c.b16 %v146, %v145
    %v172 = vpack.c.b16 %v148, %v147
    %v173 = vpack.c.b16 %v150, %v149
    %v174 = vpack.c.b16 %v152, %v151
    %v175 = vpack.c.b16 %v154, %v153
    %v176 = vpack.c.b16 %v156, %v155
    %v177 = vpack.c.b16 %v158, %v157
    %v178 = vpack.c.b16 %v160, %v159
    %vm197 = vcmask 261120
    %v199 = vsel %vm197, %v42, 0
    %201 = vmatprep.subr.bf16.mxu0 0
    %202 = vmatpush1.bf16.msra.mxu0 %v161
    %203 = vmatprep.subr.bf16.mxu0 0
    %204 = vmatpush1.bf16.msra.mxu0 %v162
    %205 = vmatprep.subr.bf16.mxu0 0
    %206 = vmatpush1.bf16.msra.mxu0 %v163
    %207 = vmatprep.subr.bf16.mxu0 0
    %208 = vmatpush1.bf16.msra.mxu0 %v164
    %209 = vmatprep.subr.bf16.mxu0 0
    %210 = vmatpush1.bf16.msra.mxu0 %v165
    %211 = vmatprep.subr.bf16.mxu0 0
    %212 = vmatpush1.bf16.msra.mxu0 %v166
    %213 = vmatprep.subr.bf16.mxu0 0
    %214 = vmatpush1.bf16.msra.mxu0 %v167
    %215 = vmatprep.subr.bf16.mxu0 0
    %216 = vmatpush1.bf16.msra.mxu0 %v168
    %217 = vmatprep.subr.bf16.mxu0 0
    %218 = vmatpush1.bf16.msra.mxu0 %v169
    %219 = vmatprep.subr.bf16.mxu0 0
    %220 = vmatpush1.bf16.msra.mxu0 %v170
    %221 = vmatprep.subr.bf16.mxu0 0
    %222 = vmatpush1.bf16.msra.mxu0 %v171
    %223 = vmatprep.subr.bf16.mxu0 0
    %224 = vmatpush1.bf16.msra.mxu0 %v172
    %225 = vmatprep.subr.bf16.mxu0 0
    %226 = vmatpush1.bf16.msra.mxu0 %v173
    %227 = vmatprep.subr.bf16.mxu0 0
    %228 = vmatpush1.bf16.msra.mxu0 %v174
    %229 = vmatprep.subr.bf16.mxu0 0
    %230 = vmatpush1.bf16.msra.mxu0 %v175
    %231 = vmatprep.subr.bf16.mxu0 0
    %232 = vmatpush1.bf16.msra.mxu0 %v176
    %233 = vmatprep.mubr.bf16.mxu0 %v41
    %234 = vmatmul.mubr.bf16.gmra.mrb[0].mxu0 %v40
    %v235 = vpop.f32.mrb[0].mxu0
    %v236 = vadd.f32 %v88, %v235
    %v237 = vpop.f32.mrb[0].mxu0
    %v238 = vpop.f32.mrb[0].mxu0
    %v239 = vpop.f32.mrb[0].mxu0
    %240 = vdwg.mxu0
    %241 = vmatprep.subr.bf16.mxu0 0
    %242 = vmatpush1.bf16.msra.mxu0 %v177
    %243 = vmatprep.subr.bf16.mxu0 0
    %244 = vmatpush1.bf16.msra.mxu0 %v178
    %245 = vmatprep.subr.bf16.mxu0 0
    %246 = vmatpush1.bf16.msra.mxu0 0
    %247 = vmatprep.subr.bf16.mxu0 0
    %248 = vmatpush1.bf16.msra.mxu0 0
    %249 = vmatprep.subr.bf16.mxu0 0
    %250 = vmatpush1.bf16.msra.mxu0 0
    %251 = vmatprep.subr.bf16.mxu0 0
    %252 = vmatpush1.bf16.msra.mxu0 0
    %253 = vmatprep.subr.bf16.mxu0 0
    %254 = vmatpush1.bf16.msra.mxu0 0
    %255 = vmatprep.subr.bf16.mxu0 0
    %256 = vmatpush1.bf16.msra.mxu0 0
    %257 = vmatprep.subr.bf16.mxu0 0
    %258 = vmatpush1.bf16.msra.mxu0 0
    %259 = vmatprep.subr.bf16.mxu0 0
    %260 = vmatpush1.bf16.msra.mxu0 0
    %261 = vmatprep.subr.bf16.mxu0 0
    %262 = vmatpush1.bf16.msra.mxu0 0
    %263 = vmatprep.subr.bf16.mxu0 0
    %264 = vmatpush1.bf16.msra.mxu0 0
    %265 = vmatprep.subr.bf16.mxu0 0
    %266 = vmatpush1.bf16.msra.mxu0 0
    %267 = vmatprep.subr.bf16.mxu0 0
    %268 = vmatpush1.bf16.msra.mxu0 0
    %269 = vmatprep.subr.bf16.mxu0 0
    %270 = vmatpush1.bf16.msra.mxu0 0
    %271 = vmatprep.subr.bf16.mxu0 0
    %272 = vmatpush1.bf16.msra.mxu0 0
    %273 = vmatprep.mubr.bf16.mxu0 0
    %274 = vmatmul.mubr.bf16.gmra.mrb[0].mxu0 %v199
    %v275 = vpop.f32.mrb[0].mxu0
    %v276 = vadd.f32 %v236, %v275
    %v277 = vpop.f32.mrb[0].mxu0
    %v278 = vpop.f32.mrb[0].mxu0
    %v279 = vpop.f32.mrb[0].mxu0
    %280 = vdwg.mxu0
    %v281 = vmax.f32 %v276, 0.0
    %v282 = vpack.c.bf16 %v281, %v281
    %v283 = vld [vmem:[%s3] sm:$0xf]
    %v284 = vld [vmem:[%s3 + $0x4] sm:$0xf]
    %v285 = vld [vmem:[%s3 + $0x8] sm:$0xf]
    %v286 = vld [vmem:[%s3 + $0xc] sm:$0xf]
    %v287 = vld [vmem:[%s3 + $0x10] sm:$0xf]
    %v288 = vld [vmem:[%s3 + $0x14] sm:$0xf]
    %v289 = vld [vmem:[%s3 + $0x18] sm:$0xf]
    %v290 = vld [vmem:[%s3 + $0x1c] sm:$0xf]
    %v291 = vld [vmem:[%s3 + $0x20] sm:$0xf]
    %v292 = vld [vmem:[%s3 + $0x24] sm:$0xf]
    %v293 = vld [vmem:[%s3 + $0x28] sm:$0xf]
    %v294 = vld [vmem:[%s3 + $0x2c] sm:$0xf]
    %v295 = vld [vmem:[%s3 + $0x30] sm:$0xf]
    %v296 = vld [vmem:[%s3 + $0x34] sm:$0xf]
    %v297 = vld [vmem:[%s3 + $0x38] sm:$0xf]
    %v298 = vld [vmem:[%s3 + $0x3c] sm:$0xf]
    %v299 = vlaneseq
    %v300 = vshrl.u32 %v299, 7
    %v301 = vsub.s32 0, %v300
    %v302 = vrot.slane %v46, %v301
    %v319 = vunpack.c.l.b16 %v283
    %v320 = vunpack.c.l.b16 %v284
    %v321 = vunpack.c.l.b16 %v285
    %v322 = vunpack.c.l.b16 %v286
    %v323 = vunpack.c.l.b16 %v287
    %v324 = vunpack.c.l.b16 %v288
    %v325 = vunpack.c.l.b16 %v289
    %v326 = vunpack.c.l.b16 %v290
    %v327 = vunpack.c.l.b16 %v291
    %v328 = vunpack.c.l.b16 %v292
    %v329 = vunpack.c.l.b16 %v293
    %v330 = vunpack.c.l.b16 %v294
    %v331 = vunpack.c.l.b16 %v295
    %v332 = vunpack.c.l.b16 %v296
    %v333 = vunpack.c.l.b16 %v297
    %v334 = vunpack.c.l.b16 %v298
    %v335 = vpack.c.b16 %v320, %v319
    %v336 = vpack.c.b16 %v322, %v321
    %v337 = vpack.c.b16 %v324, %v323
    %v338 = vpack.c.b16 %v326, %v325
    %v339 = vpack.c.b16 %v328, %v327
    %v340 = vpack.c.b16 %v330, %v329
    %v341 = vpack.c.b16 %v332, %v331
    %v342 = vpack.c.b16 %v334, %v333
    %351 = vmatprep.subr.bf16.mxu0 0
    %352 = vmatpush1.bf16.msra.mxu0 %v335
    %353 = vmatprep.subr.bf16.mxu0 0
    %354 = vmatpush1.bf16.msra.mxu0 %v336
    %355 = vmatprep.subr.bf16.mxu0 0
    %356 = vmatpush1.bf16.msra.mxu0 %v337
    %357 = vmatprep.subr.bf16.mxu0 0
    %358 = vmatpush1.bf16.msra.mxu0 %v338
    %359 = vmatprep.subr.bf16.mxu0 0
    %360 = vmatpush1.bf16.msra.mxu0 %v339
    %361 = vmatprep.subr.bf16.mxu0 0
    %362 = vmatpush1.bf16.msra.mxu0 %v340
    %363 = vmatprep.subr.bf16.mxu0 0
    %364 = vmatpush1.bf16.msra.mxu0 %v341
    %365 = vmatprep.subr.bf16.mxu0 0
    %366 = vmatpush1.bf16.msra.mxu0 %v342
    %367 = vmatprep.subr.bf16.mxu0 0
    %368 = vmatpush1.bf16.msra.mxu0 0
    %369 = vmatprep.subr.bf16.mxu0 0
    %370 = vmatpush1.bf16.msra.mxu0 0
    %371 = vmatprep.subr.bf16.mxu0 0
    %372 = vmatpush1.bf16.msra.mxu0 0
    %373 = vmatprep.subr.bf16.mxu0 0
    %374 = vmatpush1.bf16.msra.mxu0 0
    %375 = vmatprep.subr.bf16.mxu0 0
    %376 = vmatpush1.bf16.msra.mxu0 0
    %377 = vmatprep.subr.bf16.mxu0 0
    %378 = vmatpush1.bf16.msra.mxu0 0
    %379 = vmatprep.subr.bf16.mxu0 0
    %380 = vmatpush1.bf16.msra.mxu0 0
    %381 = vmatprep.subr.bf16.mxu0 0
    %382 = vmatpush1.bf16.msra.mxu0 0
    %383 = vmatprep.mubr.bf16.mxu0 0
    %384 = vmatmul.mubr.bf16.gmra.mrb[0].mxu0 %v282
    %v385 = vpop.f32.mrb[0].mxu0
    %v386 = vadd.f32 %v302, %v385
    %v387 = vpop.f32.mrb[0].mxu0
    %v388 = vpop.f32.mrb[0].mxu0
    %v389 = vpop.f32.mrb[0].mxu0
    %390 = vdwg.mxu0
    %v391 = vmax.f32 %v386, 0.0
    %v392 = vpack.c.bf16 %v391, %v391
    %v393 = vld [vmem:[%s3 + $0x40] sm:$0xf]
    %v394 = vld [vmem:[%s3 + $0x44] sm:$0xf]
    %v395 = vld [vmem:[%s3 + $0x48] sm:$0xf]
    %v396 = vld [vmem:[%s3 + $0x4c] sm:$0xf]
    %v397 = vlaneseq
    %v398 = vshrl.u32 %v397, 7
    %v399 = vsub.s32 0, %v398
    %v400 = vrot.slane %v47, %v399
    %v405 = vunpack.c.l.b16 %v393
    %v406 = vunpack.c.l.b16 %v394
    %v407 = vunpack.c.l.b16 %v395
    %v408 = vunpack.c.l.b16 %v396
    %v409 = vpack.c.b16 %v406, %v405
    %v410 = vpack.c.b16 %v408, %v407
    %v414 = vsel %vm197, %v392, 0
    %416 = vmatprep.subr.bf16.mxu0 0
    %417 = vmatpush1.bf16.msra.mxu0 %v409
    %418 = vmatprep.subr.bf16.mxu0 0
    %419 = vmatpush1.bf16.msra.mxu0 %v410
    %420 = vmatprep.subr.bf16.mxu0 0
    %421 = vmatpush1.bf16.msra.mxu0 0
    %422 = vmatprep.subr.bf16.mxu0 0
    %423 = vmatpush1.bf16.msra.mxu0 0
    %424 = vmatprep.subr.bf16.mxu0 0
    %425 = vmatpush1.bf16.msra.mxu0 0
    %426 = vmatprep.subr.bf16.mxu0 0
    %427 = vmatpush1.bf16.msra.mxu0 0
    %428 = vmatprep.subr.bf16.mxu0 0
    %429 = vmatpush1.bf16.msra.mxu0 0
    %430 = vmatprep.subr.bf16.mxu0 0
    %431 = vmatpush1.bf16.msra.mxu0 0
    %432 = vmatprep.subr.bf16.mxu0 0
    %433 = vmatpush1.bf16.msra.mxu0 0
    %434 = vmatprep.subr.bf16.mxu0 0
    %435 = vmatpush1.bf16.msra.mxu0 0
    %436 = vmatprep.subr.bf16.mxu0 0
    %437 = vmatpush1.bf16.msra.mxu0 0
    %438 = vmatprep.subr.bf16.mxu0 0
    %439 = vmatpush1.bf16.msra.mxu0 0
    %440 = vmatprep.subr.bf16.mxu0 0
    %441 = vmatpush1.bf16.msra.mxu0 0
    %442 = vmatprep.subr.bf16.mxu0 0
    %443 = vmatpush1.bf16.msra.mxu0 0
    %444 = vmatprep.subr.bf16.mxu0 0
    %445 = vmatpush1.bf16.msra.mxu0 0
    %446 = vmatprep.subr.bf16.mxu0 0
    %447 = vmatpush1.bf16.msra.mxu0 0
    %448 = vmatprep.mubr.bf16.mxu0 0
    %449 = vmatmul.mubr.bf16.gmra.mrb[0].mxu0 %v414
    %v450 = vpop.f32.mrb[0].mxu0
    %v451 = vadd.f32 %v400, %v450
    %v452 = vpop.f32.mrb[0].mxu0
    %v453 = vpop.f32.mrb[0].mxu0
    %v454 = vpop.f32.mrb[0].mxu0
    %455 = vdwg.mxu0
    %v456 = vmax.f32 %v451, 0.0
    %v457 = vpack.c.bf16 %v456, %v456
    %v458 = vld [vmem:[%s4] sm:$0xf]
    %v459 = vld [vmem:[%s4 + $0x4] sm:$0xf]
    %v460 = vld [vmem:[%s4 + $0x8] sm:$0xf]
    %v461 = vld [vmem:[%s4 + $0xc] sm:$0xf]
    %v462 = vld [vmem:[%s4 + $0x10] sm:$0xf]
    %v463 = vld [vmem:[%s4 + $0x14] sm:$0xf]
    %v464 = vld [vmem:[%s4 + $0x18] sm:$0xf]
    %v465 = vld [vmem:[%s4 + $0x1c] sm:$0xf]
    %v470 = vunpack.c.l.b16 %v462
    %v471 = vunpack.c.l.b16 %v463
    %v472 = vunpack.c.l.b16 %v464
    %v473 = vunpack.c.l.b16 %v465
    %v474 = vpack.c.b16 %v471, %v470
    %v475 = vpack.c.b16 %v473, %v472
    %v479 = vsel %vm197, %v44, 0
    %481 = vmatprep.subr.bf16.mxu0 0
    %482 = vmatpush1.bf16.msra.mxu0 %v474
    %483 = vmatprep.subr.bf16.mxu0 0
    %484 = vmatpush1.bf16.msra.mxu0 %v475
    %485 = vmatprep.subr.bf16.mxu0 0
    %486 = vmatpush1.bf16.msra.mxu0 0
    %487 = vmatprep.subr.bf16.mxu0 0
    %488 = vmatpush1.bf16.msra.mxu0 0
    %489 = vmatprep.subr.bf16.mxu0 0
    %490 = vmatpush1.bf16.msra.mxu0 0
    %491 = vmatprep.subr.bf16.mxu0 0
    %492 = vmatpush1.bf16.msra.mxu0 0
    %493 = vmatprep.subr.bf16.mxu0 0
    %494 = vmatpush1.bf16.msra.mxu0 0
    %495 = vmatprep.subr.bf16.mxu0 0
    %496 = vmatpush1.bf16.msra.mxu0 0
    %497 = vmatprep.subr.bf16.mxu0 0
    %498 = vmatpush1.bf16.msra.mxu0 0
    %499 = vmatprep.subr.bf16.mxu0 0
    %500 = vmatpush1.bf16.msra.mxu0 0
    %501 = vmatprep.subr.bf16.mxu0 0
    %502 = vmatpush1.bf16.msra.mxu0 0
    %503 = vmatprep.subr.bf16.mxu0 0
    %504 = vmatpush1.bf16.msra.mxu0 0
    %505 = vmatprep.subr.bf16.mxu0 0
    %506 = vmatpush1.bf16.msra.mxu0 0
    %507 = vmatprep.subr.bf16.mxu0 0
    %508 = vmatpush1.bf16.msra.mxu0 0
    %509 = vmatprep.subr.bf16.mxu0 0
    %510 = vmatpush1.bf16.msra.mxu0 0
    %511 = vmatprep.subr.bf16.mxu0 0
    %512 = vmatpush1.bf16.msra.mxu0 0
    %513 = vmatprep.mubr.bf16.mxu0 0
    %514 = vmatmul.mubr.bf16.gmra.mrb[0].mxu0 %v479
    %v515 = vpop.f32.mrb[0].mxu0
    %v516 = vadd.f32 0.0, %v515
    %v517 = vpop.f32.mrb[0].mxu0
    %v518 = vpop.f32.mrb[0].mxu0
    %v519 = vpop.f32.mrb[0].mxu0
    %520 = vdwg.mxu0
    %v525 = vunpack.c.l.b16 %v458
    %v526 = vunpack.c.l.b16 %v459
    %v527 = vunpack.c.l.b16 %v460
    %v528 = vunpack.c.l.b16 %v461
    %v529 = vpack.c.b16 %v526, %v525
    %v530 = vpack.c.b16 %v528, %v527
    %v534 = vsel %vm197, %v457, 0
    %536 = vmatprep.subr.bf16.mxu0 0
    %537 = vmatpush1.bf16.msra.mxu0 %v529
    %538 = vmatprep.subr.bf16.mxu0 0
    %539 = vmatpush1.bf16.msra.mxu0 %v530
    %540 = vmatprep.subr.bf16.mxu0 0
    %541 = vmatpush1.bf16.msra.mxu0 0
    %542 = vmatprep.subr.bf16.mxu0 0
    %543 = vmatpush1.bf16.msra.mxu0 0
    %544 = vmatprep.subr.bf16.mxu0 0
    %545 = vmatpush1.bf16.msra.mxu0 0
    %546 = vmatprep.subr.bf16.mxu0 0
    %547 = vmatpush1.bf16.msra.mxu0 0
    %548 = vmatprep.subr.bf16.mxu0 0
    %549 = vmatpush1.bf16.msra.mxu0 0
    %550 = vmatprep.subr.bf16.mxu0 0
    %551 = vmatpush1.bf16.msra.mxu0 0
    %552 = vmatprep.subr.bf16.mxu0 0
    %553 = vmatpush1.bf16.msra.mxu0 0
    %554 = vmatprep.subr.bf16.mxu0 0
    %555 = vmatpush1.bf16.msra.mxu0 0
    %556 = vmatprep.subr.bf16.mxu0 0
    %557 = vmatpush1.bf16.msra.mxu0 0
    %558 = vmatprep.subr.bf16.mxu0 0
    %559 = vmatpush1.bf16.msra.mxu0 0
    %560 = vmatprep.subr.bf16.mxu0 0
    %561 = vmatpush1.bf16.msra.mxu0 0
    %562 = vmatprep.subr.bf16.mxu0 0
    %563 = vmatpush1.bf16.msra.mxu0 0
    %564 = vmatprep.subr.bf16.mxu0 0
    %565 = vmatpush1.bf16.msra.mxu0 0
    %566 = vmatprep.subr.bf16.mxu0 0
    %567 = vmatpush1.bf16.msra.mxu0 0
    %568 = vmatprep.mubr.bf16.mxu0 0
    %569 = vmatmul.mubr.bf16.gmra.mrb[0].mxu0 %v534
    %v570 = vpop.f32.mrb[0].mxu0
    %v571 = vadd.f32 %v516, %v570
    %v572 = vpop.f32.mrb[0].mxu0
    %v573 = vpop.f32.mrb[0].mxu0
    %v574 = vpop.f32.mrb[0].mxu0
    %575 = vdwg.mxu0
    %v576 = vlaneseq
    %v577 = vshrl.u32 %v576, 7
    %v578 = vsub.s32 0, %v577
    %v579 = vrot.slane %v48, %v578
    %v580 = vadd.f32 %v571, %v579
    %vm581 = vcmask 97280
    %582 = vst.msk [vmem:[#allocation5] sm:$0xff] %vm581, %v580
    // Predicated region
    $region30: #{two_input_regressor.1} parent=1 // pred_check
      _
    $region31: #{two_input_regressor.1} parent=1 // pred_check_branch
      %584 = sbr.rel (0) target = $region33
    $region32: #{two_input_regressor.1} parent=1 // pred_region
      %s586 = ssub.s32 128, 128
      %587 = vsyncadd [#allocation4], %s586
      %s589 = sshll.u32 [#allocation5], 4
      %s590 = int_to_ptr.vmem [resolvable:$true] %s589
      %592 = dma.vmem_to_hbm [thread:$0]  %s590, 128, %s6, [#allocation4]
    $region33: #{two_input_regressor.1} parent=1 // pred_fallthru
      _
    // Predicated region
    $region34: #{two_input_regressor.1} parent=1 // pred_check
      _
    $region35: #{two_input_regressor.1} parent=1 // pred_check_branch
      %594 = sbr.rel (0) target = $region37
    $region36: #{two_input_regressor.1} parent=1 // pred_region
      %595 = dma.done [#allocation4], 128
    $region37: #{two_input_regressor.1} parent=1 // pred_fallthru
      _
    %596 = vsyncpa [#allocation3], 1
    %597 = vsyncpa [#allocation4], 1

</llo_original>
